<compile_context>
chip_gen: v6e
topology: v6e:2x2x1
jax: 0.10.0
libtpu: 0.0.40
codegen_flags: <defaults>
</compile_context>

<pallas_src>
import functools
from functools import partial

import jax
import jax.numpy as jnp
from jax.experimental import pallas as pl
from jax.experimental.pallas import tpu as pltpu


_RGB_W = (0.2989, 0.587, 0.114)


# ----------------------------------------------------------------------------
# VMEM accounting / batching helpers
# ----------------------------------------------------------------------------
def _ceil_to(x, m):
    return -(-x // m) * m


def _padded_block_bytes(shape, itemsize):
    """Bytes of one VMEM block after (8,128) tiling (sublane granularity is
    dtype dependent: 8 for f32, 16 for bf16, 32 for int8/uint8)."""
    s = list(shape)
    s[-1] = _ceil_to(s[-1], 128)
    if len(s) >= 2:
        s[-2] = _ceil_to(s[-2], 8 * max(1, 4 // itemsize))
    n = 1
    for d in s:
        n *= d
    return n * itemsize


@functools.lru_cache(maxsize=None)
def _vmem_limit_bytes():
    """Explicit scoped-VMEM limit: above the defaults (16 MiB v5e / 32 MiB
    v6e,v7x) but safely under physical VMEM (64 MiB/TC on v7x)."""
    try:
        cap = int(getattr(pltpu.get_tpu_info(), "vmem_capacity_bytes", 0)) or (64 << 20)
    except Exception:  # pragma: no cover - conservative fallback
        cap = 64 << 20
    return max(32 << 20, min((cap * 3) // 4, 96 << 20))


def _block_budget():
    # total footprint budget for all (double-buffered) blocks of one grid step;
    # leave half of the limit as headroom for in-kernel temporaries / spills.
    return _vmem_limit_bytes() // 2


def _tpu_params():
    return pltpu.CompilerParams(
        dimension_semantics=("parallel",),
        vmem_limit_bytes=_vmem_limit_bytes(),
    )


def _pick_batch(n, valid_fn, block_shapes_fn, budget):
    """Largest divisor b of n such that valid_fn(b) holds and the real
    (tile-padded, double-buffered) VMEM footprint of all blocks fits `budget`.
    Prefers b <= n//2 so the grid has >= 2 steps (v7x megacore split)."""
    cand = [b for b in range(1, n + 1) if n % b == 0 and valid_fn(b)]

    def footprint(b):
        return 2 * sum(_padded_block_bytes(s, isz) for s, isz in block_shapes_fn(b))

    fits = [b for b in cand if footprint(b) <= budget]
    if fits:
        split = [b for b in fits if b <= max(1, n // 2)]
        return max(split) if split else max(fits)
    # TODO(synk): nothing fits -> needs row/lane tiling for very large frames.
    return min(cand)


# ----------------------------------------------------------------------------
# Kernel 1 (fused): rescale (x*(2/255)-1) + per-(t,c) spatial mean-centering
#                   + rgb2gray (fixed 1x1 conv, weights 0.2989/0.587/0.114).
# Layout: (T*C, H*W) -- rows are (frame, channel), spatial on the lane axis.
# ----------------------------------------------------------------------------
def _frontend_kernel(x_ref, y_ref, mean_ref, gray_ref, *, frames, C, rescale, inv_hw):
    x = x_ref[...].astype(jnp.float32)                       # (frames*C, HW)
    if rescale:
        x = x * jnp.float32(2.0 / 255.0) - 1.0               # == (x/255-0.5)/0.5
    # TODO(synk): single-pass f32 sum; switch to a two-phase reduction for
    # very large HW (rounding + VMEM).
    m = jnp.sum(x, axis=-1, keepdims=True) * jnp.float32(inv_hw)   # (frames*C, 1)
    xc = x - m
    y_ref[...] = xc
    mean_ref[...] = m
    # per-frame 3-row weighted combine on contiguous slices (unrolled; `frames`
    # is a small static count bounded by the VMEM budget).
    for t in range(frames):
        r = xc[t * C:(t + 1) * C, :]                          # (C, HW)
        gray_ref[t:t + 1, :] = (_RGB_W[0] * r[0:1, :]
                                + _RGB_W[1] * r[1:2, :]
                                + _RGB_W[2] * r[2:3, :])


def rescale_center_gray(noisy, *, rescale=True):
    """Fused front end: centered image, per-(t,c) means and gray, one HBM pass."""
    T, C, H, W = noisy.shape
    assert C == 3, "rgb2gray fusion requires 3 channels"
    HW = H * W
    x = noisy.reshape(T * C, HW)                 # free reshape, dtype preserved
    isz = jnp.dtype(x.dtype).itemsize

    def blocks(b):
        R = C * b
        return [((R, HW), isz),                  # input block
                ((R, HW), 4), ((R, 1), 4), ((b, HW), 4),   # y, means, gray
                ((R, HW), 4)]                    # in-kernel temporary (xc)

    # sublane-tiling rule: the block's second-minor dim must be a multiple of 8
    # or cover the whole array -> BT must satisfy (C*BT) % 8 == 0 or BT == T.
    BT = _pick_batch(T, lambda b: (C * b) % 8 == 0 or b == T, blocks, _block_budget())
    R = C * BT

    kern = partial(_frontend_kernel, frames=BT, C=C, rescale=rescale, inv_hw=1.0 / HW)
    y, m, g = pl.pallas_call(
        kern,
        out_shape=(
            jax.ShapeDtypeStruct((T * C, HW), jnp.float32),
            jax.ShapeDtypeStruct((T * C, 1), jnp.float32),   # tiny; lane-padded
            jax.ShapeDtypeStruct((T, HW), jnp.float32),
        ),
        grid=(T // BT,),
        in_specs=[pl.BlockSpec((R, HW), lambda i: (i, 0))],
        out_specs=(
            pl.BlockSpec((R, HW), lambda i: (i, 0)),
            pl.BlockSpec((R, 1), lambda i: (i, 0)),
            pl.BlockSpec((BT, HW), lambda i: (i, 0)),
        ),
        compiler_params=_tpu_params(),
    )(x)
    return (y.reshape(T, C, H, W),
            m.reshape(T, C, 1, 1),
            g.reshape(T, 1, H, W))


# ----------------------------------------------------------------------------
# Kernel 2 (standalone rgb2gray) -- only used when an external srch_img is
# supplied (not exercised in the demo).
# ----------------------------------------------------------------------------
def _rgb2gray_kernel(x_ref, g_ref, *, frames, C):
    x = x_ref[...].astype(jnp.float32)                        # (frames*C, HW)
    for t in range(frames):
        r = x[t * C:(t + 1) * C, :]
        g_ref[t:t + 1, :] = (_RGB_W[0] * r[0:1, :]
                             + _RGB_W[1] * r[1:2, :]
                             + _RGB_W[2] * r[2:3, :])


def rgb2gray(x):
    T, C, H, W = x.shape
    assert C == 3
    HW = H * W
    xr = x.reshape(T * C, HW)
    isz = jnp.dtype(xr.dtype).itemsize

    def blocks(b):
        R = C * b
        return [((R, HW), isz), ((b, HW), 4)]

    BT = _pick_batch(T, lambda b: (C * b) % 8 == 0 or b == T, blocks, _block_budget())
    R = C * BT
    g = pl.pallas_call(
        partial(_rgb2gray_kernel, frames=BT, C=C),
        out_shape=jax.ShapeDtypeStruct((T, HW), jnp.float32),
        grid=(T // BT,),
        in_specs=[pl.BlockSpec((R, HW), lambda i: (i, 0))],
        out_specs=pl.BlockSpec((BT, HW), lambda i: (i, 0)),
        compiler_params=_tpu_params(),
    )(xr)
    return g.reshape(T, 1, H, W)


# ----------------------------------------------------------------------------
# Kernel 3: separable fixed bilinear 3x3 "valid" conv (kernel =
# outer([1/4,1/2,1/4])) with the trailing constant(-1) pad written directly
# into the output block (4 border strips + interior; no concat temporaries).
# ----------------------------------------------------------------------------
def _bilinear_cpad_kernel(x_ref, o_ref, *, Ho, Wo, cpad):
    x = x_ref[...].astype(jnp.float32)                        # (B, Hp, Wp)
    # vertical pass (sublane shifts)
    v = 0.25 * x[:, 0:Ho, :] + 0.5 * x[:, 1:Ho + 1, :] + 0.25 * x[:, 2:Ho + 2, :]
    # horizontal pass (lane shifts)
    y = 0.25 * v[:, :, 0:Wo] + 0.5 * v[:, :, 1:Wo + 1] + 0.25 * v[:, :, 2:Wo + 2]
    if cpad == 0:
        o_ref[...] = y
        return
    B = y.shape[0]
    Hf, Wf = Ho + 2 * cpad, Wo + 2 * cpad
    border_tb = jnp.full((B, cpad, Wf), -1.0, jnp.float32)
    border_lr = jnp.full((B, Ho, cpad), -1.0, jnp.float32)
    o_ref[:, 0:cpad, :] = border_tb                           # top
    o_ref[:, cpad + Ho:Hf, :] = border_tb                     # bottom
    o_ref[:, cpad:cpad + Ho, 0:cpad] = border_lr              # left
    o_ref[:, cpad:cpad + Ho, cpad + Wo:Wf] = border_lr        # right
    o_ref[:, cpad:cpad + Ho, cpad:cpad + Wo] = y              # interior


def bilinear_conv_cpad(x, cpad):
    """(N, Hp, Wp) -> (N, Hp-2+2*cpad, Wp-2+2*cpad): valid 3x3 bilinear conv
    followed by a constant(-1) pad of `cpad`, all inside one Pallas kernel."""
    N, Hp, Wp = x.shape
    Ho, Wo = Hp - 2, Wp - 2
    Hf, Wf = Ho + 2 * cpad, Wo + 2 * cpad
    isz = jnp.dtype(x.dtype).itemsize

    def blocks(b):
        return [((b, Hp, Wp), isz), ((b, Hf, Wf), 4),
                ((b, Ho, Wp), 4), ((b, Ho, Wo), 4)]           # + temps v, y

    # TODO(synk): row-tile (H tiles with a 2-row halo) for very large frames.
    B = _pick_batch(N, lambda b: True, blocks, _block_budget())
    kern = partial(_bilinear_cpad_kernel, Ho=Ho, Wo=Wo, cpad=cpad)
    return pl.pallas_call(
        kern,
        out_shape=jax.ShapeDtypeStruct((N, Hf, Wf), jnp.float32),
        grid=(N // B,),
        in_specs=[pl.BlockSpec((B, Hp, Wp), lambda i: (i, 0, 0))],
        out_specs=pl.BlockSpec((B, Hf, Wf), lambda i: (i, 0, 0)),
        compiler_params=_tpu_params(),
    )(x)


# ----------------------------------------------------------------------------
# Padding glue (mirrors nn_func.pad calls in the module).
# TODO(synk): fold these reflect/constant pads into the Pallas kernels.
# ----------------------------------------------------------------------------
def _reflect_pad_hw(x, p):
    return jnp.pad(x, ((0, 0), (0, 0), (p, p), (p, p)), mode="reflect")


def _const_pad_hw(x, p, val):
    return jnp.pad(x, ((0, 0), (0, 0), (p, p), (p, p)),
                   mode="constant", constant_values=val)


# ----------------------------------------------------------------------------
# LIDIA module (fixed, non-trainable front-end weights; no checkpoint loading).
# ----------------------------------------------------------------------------
class LIDIA:
    def __init__(self, pad_offs, rgb=True):
        self.pad_offs = pad_offs
        self.rgb = rgb
        self.patch_w = 5 if rgb else 7
        self.ver_size = 80 if rgb else 64
        # fixed weights exactly as in __init__ of the PyTorch module:
        self.rgb2gray_w = jnp.array(_RGB_W, jnp.float32)
        k1 = jnp.array([0.25, 0.5, 0.25], jnp.float32)
        self.bilinear_k = jnp.outer(k1, k1)

    # --- pad_crop0: reflect(patch_w-1) then constant(14, value=-1) ----------
    def pad_crop0(self, image, train):
        if train:
            p = self.pad_offs
            return image[:, :, p:image.shape[2] - p, p:image.shape[3] - p]
        image = _reflect_pad_hw(image, self.patch_w - 1)
        return _const_pad_hw(image, 14, -1.0)

    # --- pad_crop1 -----------------------------------------------------------
    def pad_crop1(self, image, train, mode):
        if train:
            return image
        if mode == "reflect":
            bilinear_pad = 1
            averaging_pad = (self.patch_w - 1) // 2
            patch_w_scale_1 = 2 * self.patch_w - 1
            find_nn_pad = (patch_w_scale_1 - 1) // 2
            return _reflect_pad_hw(image, averaging_pad + bilinear_pad + find_nn_pad)
        if mode == "constant":
            return _const_pad_hw(image, 28, -1.0)
        raise AssertionError

    # --- prepare_image_n1: reflect pad -> bilinear conv (+constant pad fused)
    def prepare_image_n1(self, image_n, train):
        if train:
            T, C, H, W = image_n.shape
            y = bilinear_conv_cpad(image_n.reshape(T * C, H, W), 0)
            return y.reshape(T, C, H - 2, W - 2)
        x = self.pad_crop1(image_n, train, "reflect")          # one XLA pad op
        T, C, Hp, Wp = x.shape
        y = bilinear_conv_cpad(x.reshape(T * C, Hp, Wp), 28)   # conv + const pad
        return y.reshape(T, C, Hp - 2 + 56, Wp - 2 + 56)

    # --- forward (front-end of the primary network backbone) ----------------
    def forward(self, noisy, sigma, srch_img=None, rescale=True, train=False):
        # fused Pallas pass: rescale + center + per-(t,c) means + rgb2gray
        noisy_c, means, gray_c = rescale_center_gray(noisy, rescale=rescale)

        if srch_img is None:
            srch = noisy_c
            gray_srch = gray_c
        else:
            srch = srch_img / 255.0
            gray_srch = rgb2gray(srch)

        # front-end of run_nn0: padded search image + gray search image
        image_n0 = self.pad_crop0(srch, train)

        # front-end of run_nn1
        image_n1 = self.prepare_image_n1(noisy_c, train)

        # TODO(synk): run_nn0/run_nn1 non-local patch search, PatchDenoiseNet
        # and run_parts_final (fold aggregation) come from mixins/modules not
        # included in the provided source; not implemented rather than faked.

        return {
            "noisy_centered": noisy_c,
            "means": means,
            "image_n0": image_n0,
            "gray_srch": gray_srch,
            "image_n1": image_n1,
        }


# ----------------------------------------------------------------------------
if __name__ == "__main__":
    key = jax.random.PRNGKey(0)
    noisy = jax.random.uniform(key, (2, 3, 16, 16), jnp.float32, 0.0, 255.0)
    sigma = 25.0

    model = LIDIA(pad_offs=0, rgb=True)
    out = model.forward(noisy, sigma, rescale=True, train=False)
    out = jax.block_until_ready(out)

    # --- reference checks (pure JAX) ---
    x = (noisy / 255.0 - 0.5) / 0.5
    m = x.mean((-2, -1), keepdims=True)
    xc = x - m
    assert jnp.allclose(out["noisy_centered"], xc, atol=1e-5)
    assert jnp.allclose(out["means"], m, atol=1e-5)

    gray_ref = jnp.einsum("tchw,c->thw", xc, model.rgb2gray_w)[:, None]
    assert jnp.allclose(out["gray_srch"], gray_ref, atol=1e-5)

    n0_ref = _const_pad_hw(_reflect_pad_hw(xc, model.patch_w - 1), 14, -1.0)
    assert jnp.allclose(out["image_n0"], n0_ref, atol=1e-5)

    p = (model.patch_w - 1) // 2 + 1 + (2 * model.patch_w - 2) // 2
    xr = _reflect_pad_hw(xc, p)
    T, C, Hp, Wp = xr.shape
    conv_ref = jax.lax.conv_general_dilated(
        xr.reshape(T * C, 1, Hp, Wp), model.bilinear_k.reshape(1, 1, 3, 3),
        (1, 1), "VALID", dimension_numbers=("NCHW", "OIHW", "NCHW"),
    ).reshape(T, C, Hp - 2, Wp - 2)
    conv_ref = _const_pad_hw(conv_ref, 28, -1.0)
    assert jnp.allclose(out["image_n1"], conv_ref, atol=1e-5)

    print("KERNEL_OK")
</pallas_src>

<mosaic_0001>
module attributes {stable_mosaic.version = 11 : i64} {
  func.func @_frontend_kernel(%arg0: i32, %arg1: memref<6x256xf32, #tpu.memory_space<vmem>>, %arg2: memref<6x256xf32, #tpu.memory_space<vmem>>, %arg3: memref<6x1xf32, #tpu.memory_space<vmem>>, %arg4: memref<2x256xf32, #tpu.memory_space<vmem>>) attributes {dimension_semantics = [#tpu.dimension_semantics<parallel>], iteration_bounds = array<i64: 1>, scalar_prefetch = 0 : i64, scratch_operands = 0 : i64, tpu.core_type = #tpu.core_type<tc>, window_params = [{transform_indices = @transform_0, window_bounds = array<i64: 6, 256>}, {transform_indices = @transform_1, window_bounds = array<i64: 6, 256>}, {transform_indices = @transform_2, window_bounds = array<i64: 6, 1>}, {transform_indices = @transform_3, window_bounds = array<i64: 2, 256>}]} {
    %c0 = arith.constant 0 : index
    %c0_0 = arith.constant 0 : index
    %0 = vector.load %arg1[%c0, %c0_0] : memref<6x256xf32, #tpu.memory_space<vmem>>, vector<6x256xf32>
    %cst = arith.constant 0.00784313772 : f32
    %1 = vector.broadcast %cst : f32 to vector<6x256xf32>
    %2 = arith.mulf %0, %1 : vector<6x256xf32>
    %cst_1 = arith.constant 1.000000e+00 : f32
    %3 = vector.broadcast %cst_1 : f32 to vector<6x256xf32>
    %4 = arith.subf %2, %3 : vector<6x256xf32>
    %cst_2 = arith.constant dense<0.000000e+00> : vector<6xf32>
    %5 = vector.multi_reduction <add>, %4, %cst_2 [1] : vector<6x256xf32> to vector<6xf32>
    %6 = vector.shape_cast %5 : vector<6xf32> to vector<6x1xf32>
    %cst_3 = arith.constant 3.906250e-03 : f32
    %7 = vector.broadcast %cst_3 : f32 to vector<6x1xf32>
    %8 = arith.mulf %6, %7 : vector<6x1xf32>
    %9 = vector.broadcast %8 : vector<6x1xf32> to vector<6x256xf32>
    %10 = arith.subf %4, %9 : vector<6x256xf32>
    %c0_4 = arith.constant 0 : index
    %c0_5 = arith.constant 0 : index
    %11 = vector.load %arg2[%c0_4, %c0_5] : memref<6x256xf32, #tpu.memory_space<vmem>>, vector<6x256xf32>
    tpu.vector_store %arg2[%c0_4, %c0_5], %10 {strides = array<i32>} : memref<6x256xf32, #tpu.memory_space<vmem>>, vector<6x256xf32>,
    %c0_6 = arith.constant 0 : index
    %c0_7 = arith.constant 0 : index
    %12 = vector.load %arg3[%c0_6, %c0_7] : memref<6x1xf32, #tpu.memory_space<vmem>>, vector<6x1xf32>
    tpu.vector_store %arg3[%c0_6, %c0_7], %8 {strides = array<i32>} : memref<6x1xf32, #tpu.memory_space<vmem>>, vector<6x1xf32>,
    %13 = vector.extract_strided_slice %10 {offsets = [0, 0], sizes = [3, 256], strides = [1, 1]} : vector<6x256xf32> to vector<3x256xf32>
    %14 = vector.extract_strided_slice %13 {offsets = [0, 0], sizes = [1, 256], strides = [1, 1]} : vector<3x256xf32> to vector<1x256xf32>
    %cst_8 = arith.constant 2.989000e-01 : f32
    %15 = vector.broadcast %cst_8 : f32 to vector<1x256xf32>
    %16 = arith.mulf %15, %14 : vector<1x256xf32>
    %17 = vector.extract_strided_slice %13 {offsets = [1, 0], sizes = [1, 256], strides = [1, 1]} : vector<3x256xf32> to vector<1x256xf32>
    %cst_9 = arith.constant 5.870000e-01 : f32
    %18 = vector.broadcast %cst_9 : f32 to vector<1x256xf32>
    %19 = arith.mulf %18, %17 : vector<1x256xf32>
    %20 = arith.addf %16, %19 : vector<1x256xf32>
    %21 = vector.extract_strided_slice %13 {offsets = [2, 0], sizes = [1, 256], strides = [1, 1]} : vector<3x256xf32> to vector<1x256xf32>
    %cst_10 = arith.constant 1.140000e-01 : f32
    %22 = vector.broadcast %cst_10 : f32 to vector<1x256xf32>
    %23 = arith.mulf %22, %21 : vector<1x256xf32>
    %24 = arith.addf %20, %23 : vector<1x256xf32>
    %c0_11 = arith.constant 0 : index
    %c0_12 = arith.constant 0 : index
    %25 = vector.load %arg4[%c0_11, %c0_12] : memref<2x256xf32, #tpu.memory_space<vmem>>, vector<1x256xf32>
    tpu.vector_store %arg4[%c0_11, %c0_12], %24 {strides = array<i32>} : memref<2x256xf32, #tpu.memory_space<vmem>>, vector<1x256xf32>,
    %26 = vector.extract_strided_slice %10 {offsets = [3, 0], sizes = [3, 256], strides = [1, 1]} : vector<6x256xf32> to vector<3x256xf32>
    %27 = vector.extract_strided_slice %26 {offsets = [0, 0], sizes = [1, 256], strides = [1, 1]} : vector<3x256xf32> to vector<1x256xf32>
    %cst_13 = arith.constant 2.989000e-01 : f32
    %28 = vector.broadcast %cst_13 : f32 to vector<1x256xf32>
    %29 = arith.mulf %28, %27 : vector<1x256xf32>
    %30 = vector.extract_strided_slice %26 {offsets = [1, 0], sizes = [1, 256], strides = [1, 1]} : vector<3x256xf32> to vector<1x256xf32>
    %cst_14 = arith.constant 5.870000e-01 : f32
    %31 = vector.broadcast %cst_14 : f32 to vector<1x256xf32>
    %32 = arith.mulf %31, %30 : vector<1x256xf32>
    %33 = arith.addf %29, %32 : vector<1x256xf32>
    %34 = vector.extract_strided_slice %26 {offsets = [2, 0], sizes = [1, 256], strides = [1, 1]} : vector<3x256xf32> to vector<1x256xf32>
    %cst_15 = arith.constant 1.140000e-01 : f32
    %35 = vector.broadcast %cst_15 : f32 to vector<1x256xf32>
    %36 = arith.mulf %35, %34 : vector<1x256xf32>
    %37 = arith.addf %33, %36 : vector<1x256xf32>
    %c1 = arith.constant 1 : index
    %c0_16 = arith.constant 0 : index
    %38 = vector.load %arg4[%c1, %c0_16] : memref<2x256xf32, #tpu.memory_space<vmem>>, vector<1x256xf32>
    tpu.vector_store %arg4[%c1, %c0_16], %37 {strides = array<i32>} : memref<2x256xf32, #tpu.memory_space<vmem>>, vector<1x256xf32>,
    return
  }
  func.func @transform_0(%arg0: i32) -> (i32, i32) {
    %c0_i32 = arith.constant 0 : i32
    %c0_i32_0 = arith.constant 0 : i32
    return %arg0, %c0_i32 : i32, i32
  }
  func.func @transform_1(%arg0: i32) -> (i32, i32) {
    %c0_i32 = arith.constant 0 : i32
    %c0_i32_0 = arith.constant 0 : i32
    return %arg0, %c0_i32 : i32, i32
  }
  func.func @transform_2(%arg0: i32) -> (i32, i32) {
    %c0_i32 = arith.constant 0 : i32
    %c0_i32_0 = arith.constant 0 : i32
    return %arg0, %c0_i32 : i32, i32
  }
  func.func @transform_3(%arg0: i32) -> (i32, i32) {
    %c0_i32 = arith.constant 0 : i32
    %c0_i32_0 = arith.constant 0 : i32
    return %arg0, %c0_i32 : i32, i32
  }
}

</mosaic_0001>

<llo_original>
// kernel: tpu_custom_call.1
$region0: #{tpu_custom_call.1}
  #allocation0 [shape = 'u32[]', space=smem, size = 0x4, offset = 0x4, fixed_abs, tag = 'smem constant byte address 0x4 - core index']
  #allocation1 [shape = 'u32[144,128]{1,0:T(1,128)}', space=vmem, size = 0x12000, scoped, tag = 'internal scratch']
  %s0 = inlined_call_operand.hbm [shape: f32[6,256], index: 0, kind: input, shape index: {}]
  %s1 = inlined_call_operand.hbm [shape: f32[6,256], index: 1, kind: output, shape index: {0}]
  %s2 = inlined_call_operand.vmem [shape: f32[6,1], index: 2, kind: output, shape index: {1}]
  %s3 = inlined_call_operand.hbm [shape: f32[2,256], index: 3, kind: output, shape index: {2}]
  %4 = xla_tuple %s1, %s2, %s3
  %s5 = sld [smem:[#allocation0]]
  $region34: #{tpu_custom_call.1} parent=0
    _
  %s7 = ssub.s32 1, %s5
  %s8 = scalar_select 0, %s7, %s5
  $region1: #{tpu_custom_call.1} parent=0
    #allocation2 [shape = 'u8[8192]{0}', space=vmem, size = 0x2000, scoped, tag = 'input window, operand 0, single buffered']
    #allocation3 [shape = 's32[1]{0}', space=sflag, size = 0x4, scoped, tag = 'scoped memory for tpu_custom_call.1']
    #allocation4 [shape = 's32[1]{0}', space=sflag, size = 0x4, scoped, tag = 'scoped memory for tpu_custom_call.1']
    #allocation5 [shape = 'u8[8192]{0}', space=vmem, size = 0x2000, scoped, tag = 'output window, operand 0, single buffered']
    #allocation6 [shape = 'u8[2048]{0}', space=vmem, size = 0x800, scoped, tag = 'output window, operand 2, single buffered']
    #allocation7 [shape = 's32[1]{0}', space=sflag, size = 0x4, scoped, tag = 'scoped memory for tpu_custom_call.1']
    %9 = vsyncpa [#allocation3], 0
    %10 = vsyncpa [#allocation4], 0
    %11 = vsyncpa [#allocation7], 0
    // Predicated region
    $region2: #{tpu_custom_call.1} parent=1 // pred_check
      _
    $region3: #{tpu_custom_call.1} parent=1 // pred_check_branch
      %13 = sbr.rel (0) target = $region5
    $region4: #{tpu_custom_call.1} parent=1 // pred_region
      %s15 = ssub.s32 256, 256
      %16 = vsyncadd [#allocation3], %s15
      %s18 = sshll.u32 [#allocation2], 4
      %s19 = int_to_ptr.vmem [resolvable:$true] %s18
      %21 = dma.hbm_to_vmem [thread:$0]  %s0, 256, %s19, [#allocation3]
    $region5: #{tpu_custom_call.1} parent=1 // pred_fallthru
      _
    // Predicated region
    $region6: #{tpu_custom_call.1} parent=1 // pred_check
      _
    $region7: #{tpu_custom_call.1} parent=1 // pred_check_branch
      %23 = sbr.rel (0) target = $region9
    $region8: #{tpu_custom_call.1} parent=1 // pred_region
      %24 = dma.done [#allocation3], 256
    $region9: #{tpu_custom_call.1} parent=1 // pred_fallthru
      _
    %v25 = vld [vmem:[#allocation2] sm:$0x3f]
    %v26 = vld [vmem:[#allocation2 + $0x8] sm:$0x3f]
    %v27 = vmul.f32 %v25, 0.007843138
    %v28 = vmul.f32 %v26, 0.007843138
    %v29 = vsub.f32 %v27, 1.0
    %v30 = vsub.f32 %v28, 1.0
    %vm31 = vcmask 1045504
    %v32 = vsel %vm31, %v29, 0.0
    %v33 = vsel %vm31, %v30, 0.0
    %v34 = vadd.f32 %v32, %v33
    %35 = vadd.xlane.f32.xlu0 %v34
    %v36 = vpop.xlane.xlu0 %35
    %v37 = vmul.f32 %v36, 0.00390625
    %v38 = vsub.f32 %v29, %v37
    %v39 = vsub.f32 %v30, %v37
    %40 = vst [vmem:[#allocation5] sm:$0x3f] %v38
    %41 = vst [vmem:[#allocation5 + $0x8] sm:$0x3f] %v39
    %vm42 = vcmask 5120
    %43 = vst.msk [vmem:[%s2] sm:$0x3f] %vm42, %v37
    %v44 = vmul.f32 %v38, 0.2989
    %v45 = vmul.f32 %v39, 0.2989
    %v46 = vmul.f32 %v38, 0.587
    %v47 = vmul.f32 %v39, 0.587
    %v50 = vrot.slane %v46, 1
    %v51 = vrot.slane %v47, 1
    %v54 = vadd.f32 %v44, %v50
    %v55 = vadd.f32 %v45, %v51
    %v56 = vmul.f32 %v38, 0.114
    %v57 = vmul.f32 %v39, 0.114
    %v60 = vrot.slane %v56, 2
    %v61 = vrot.slane %v57, 2
    %v64 = vadd.f32 %v54, %v60
    %v65 = vadd.f32 %v55, %v61
    %v68 = vcombine.low %v64, %v65
    %v70 = vunpack.c.l.s4 1966171168
    %v71 = vunpack.c.0.s8 %v70
    %v72 = vlaneseq
    %v73 = vshrl.u32 %v72, 7
    %v74 = vsub.s32 %v71, %v73
    %v75 = vrot.slane %v68, %v74
    %v77 = vunpack.c.l.s4 1966171168
    %v78 = vunpack.c.0.s8 %v77
    %v79 = vlaneseq
    %v80 = vshrl.u32 %v79, 7
    %v81 = vsub.s32 %v78, %v80
    %v82 = vrot.slane %v75, %v81
    %v84 = vlaneseq
    %vm85 = vcmp.ge.s32.totalorder %v84, 0
    %vm86 = vcmp.lt.s32.totalorder %v84, 256
    %vm87 = vmand %vm85, %vm86
    %88 = vst.msk [vmem:[#allocation6] ss:$2 sm:$0x3] %vm87, %v82
    %v89 = vcombine.high %v75, %v75
    %v91 = vunpack.c.l.s4 1966171168
    %v92 = vunpack.c.0.s8 %v91
    %v93 = vlaneseq
    %v94 = vshrl.u32 %v93, 7
    %v95 = vsub.s32 %v92, %v94
    %v96 = vrot.slane %v89, %v95
    %v97 = vcombine.high %v96, %v96
    %s99 = scalar_lea.vmem [#allocation6], 1
    %100 = vst.msk [vmem:[%s99] ss:$2 sm:$0x3] %vm87, %v97
    // Predicated region
    $region10: #{tpu_custom_call.1} parent=1 // pred_check
      _
    $region11: #{tpu_custom_call.1} parent=1 // pred_check_branch
      %102 = sbr.rel (0) target = $region13
    $region12: #{tpu_custom_call.1} parent=1 // pred_region
      %s104 = ssub.s32 256, 256
      %105 = vsyncadd [#allocation4], %s104
      %s107 = sshll.u32 [#allocation5], 4
      %s108 = int_to_ptr.vmem [resolvable:$true] %s107
      %110 = dma.vmem_to_hbm [thread:$0]  %s108, 256, %s1, [#allocation4]
    $region13: #{tpu_custom_call.1} parent=1 // pred_fallthru
      _
    // Predicated region
    $region14: #{tpu_custom_call.1} parent=1 // pred_check
      _
    $region15: #{tpu_custom_call.1} parent=1 // pred_check_branch
      %112 = sbr.rel (0) target = $region17
    $region16: #{tpu_custom_call.1} parent=1 // pred_region
      _
    $region17: #{tpu_custom_call.1} parent=1 // pred_fallthru
      _
    // Predicated region
    $region18: #{tpu_custom_call.1} parent=1 // pred_check
      _
    $region19: #{tpu_custom_call.1} parent=1 // pred_check_branch
      %114 = sbr.rel (0) target = $region21
    $region20: #{tpu_custom_call.1} parent=1 // pred_region
      %s116 = ssub.s32 64, 64
      %117 = vsyncadd [#allocation7], %s116
      %s119 = sshll.u32 [#allocation6], 4
      %s120 = int_to_ptr.vmem [resolvable:$true] %s119
      %122 = dma.vmem_to_hbm [thread:$0]  %s120, 64, %s3, [#allocation7]
    $region21: #{tpu_custom_call.1} parent=1 // pred_fallthru
      _
    // Predicated region
    $region22: #{tpu_custom_call.1} parent=1 // pred_check
      _
    $region23: #{tpu_custom_call.1} parent=1 // pred_check_branch
      %124 = sbr.rel (0) target = $region25
    $region24: #{tpu_custom_call.1} parent=1 // pred_region
      %125 = dma.done [#allocation4], 256
    $region25: #{tpu_custom_call.1} parent=1 // pred_fallthru
      _
    // Predicated region
    $region26: #{tpu_custom_call.1} parent=1 // pred_check
      _
    $region27: #{tpu_custom_call.1} parent=1 // pred_check_branch
      %127 = sbr.rel (0) target = $region29
    $region28: #{tpu_custom_call.1} parent=1 // pred_region
      _
    $region29: #{tpu_custom_call.1} parent=1 // pred_fallthru
      _
    // Predicated region
    $region30: #{tpu_custom_call.1} parent=1 // pred_check
      _
    $region31: #{tpu_custom_call.1} parent=1 // pred_check_branch
      %129 = sbr.rel (0) target = $region33
    $region32: #{tpu_custom_call.1} parent=1 // pred_region
      %130 = dma.done [#allocation7], 64
    $region33: #{tpu_custom_call.1} parent=1 // pred_fallthru
      _
    %131 = vsyncpa [#allocation3], 1
    %132 = vsyncpa [#allocation4], 1
    %133 = vsyncpa [#allocation7], 1

</llo_original>
